<compile_context>
chip_gen: v7x
topology: tpu7x:2x2x1
jax: 0.10.0
libtpu: 0.0.40
codegen_flags: <defaults>
</compile_context>

<pallas_src>
import jax
import jax.numpy as jnp
from jax.experimental import pallas as pl
from jax.experimental.pallas import tpu as pltpu


def gps_mlp_kernel(xt_ref, w1_ref, b1_ref, w2_ref, b2_ref, w3_ref, b3_ref, ot_ref):
    # Transposed formulation: h = W @ x_t, with x_t (C, TB) bf16, W (out, in) bf16,
    # bias (out, 1) f32 broadcasting across the lane (batch) axis.
    xt = xt_ref[...]                                                  # (C, TB) bf16
    h1 = jnp.dot(w1_ref[...], xt, preferred_element_type=jnp.float32) + b1_ref[...]
    h1 = jnp.maximum(h1, 0.0)
    # TODO(synk): nn.Dropout(0.15) is identity in eval mode; a training-mode mask
    # would use pltpu.prng_seed / pltpu.prng_random_bits.
    h2 = jnp.dot(w2_ref[...], h1.astype(jnp.bfloat16),
                 preferred_element_type=jnp.float32) + b2_ref[...]
    h2 = jnp.maximum(h2, 0.0)
    out = jnp.dot(w3_ref[...], h2.astype(jnp.bfloat16),
                  preferred_element_type=jnp.float32) + b3_ref[...]
    ot_ref[...] = out.astype(ot_ref.dtype)                            # (2, TB) lane-dense


def _round_up(n, m):
    return ((n + m - 1) // m) * m


def gps_mlp_forward(x, params, *, tb_max=512):
    """x: (B, ...) flattened to (B, num_channels); returns (B, 2) float32."""
    B = x.shape[0]
    w1, b1, w2, b2, w3, b3 = params                    # weights stored (in, out)
    C = w1.shape[0]
    H1, H2, O = w1.shape[1], w2.shape[1], w3.shape[1]

    # torch.flatten(x, 1) + bf16 cast (halves HBM read bytes for the kernel).
    x2d = x.reshape(B, -1).astype(jnp.bfloat16)
    assert x2d.shape[1] == C, (x2d.shape, C)
    # Feature-major so the batch tile sits on the lane axis; the transpose fuses
    # with the bf16 cast in XLA (layout plumbing, not extra compute in-kernel).
    x_t = x2d.T                                        # (C, B)

    # Batch tile from the measured mem-bound sweep; small B -> single grid step.
    TB = tb_max if B >= tb_max else _round_up(B, 8)
    B_pad = _round_up(B, TB)
    if B_pad != B:
        x_t = jnp.pad(x_t, ((0, 0), (0, B_pad - B)))
    grid = (pl.cdiv(B_pad, TB),)

    # Weights as (out, in) bf16; biases as (out, 1) f32 columns.
    w1t, w2t, w3t = (w.T.astype(jnp.bfloat16) for w in (w1, w2, w3))
    b1c, b2c, b3c = (b.reshape(-1, 1).astype(jnp.float32) for b in (b1, b2, b3))

    const = lambda i: (0, 0)    # same block every step -> params stay VMEM-resident

    out_t = pl.pallas_call(
        gps_mlp_kernel,
        out_shape=jax.ShapeDtypeStruct((O, B_pad), jnp.float32),
        grid=grid,
        in_specs=[
            pl.BlockSpec((C, TB), lambda i: (0, i)),   # streamed, double-buffered
            pl.BlockSpec((H1, C), const),
            pl.BlockSpec((H1, 1), const),
            pl.BlockSpec((H2, H1), const),
            pl.BlockSpec((H2, 1), const),
            pl.BlockSpec((O, H2), const),
            pl.BlockSpec((O, 1), const),
        ],
        out_specs=pl.BlockSpec((O, TB), lambda i: (0, i)),
        compiler_params=pltpu.CompilerParams(dimension_semantics=("parallel",)),
    )(x_t, w1t, b1c, w2t, b2c, w3t, b3c)

    return out_t[:, :B].T                              # (B, 2) f32


def init_params(key, num_channels=24):
    """Deterministic init mimicking nn.Linear (uniform +-1/sqrt(fan_in)).
    Weights stored as (in, out), biases as (1, out)."""
    dims = [(num_channels, 64), (64, 16), (16, 2)]
    params = []
    for i, (fan_in, fan_out) in enumerate(dims):
        kw, kb = jax.random.split(jax.random.fold_in(key, i))
        bound = 1.0 / jnp.sqrt(float(fan_in))
        w = jax.random.uniform(kw, (fan_in, fan_out), jnp.float32, -bound, bound)
        b = jax.random.uniform(kb, (1, fan_out), jnp.float32, -bound, bound)
        params += [w, b]
    return tuple(params)


def reference_forward(x, params):
    B = x.shape[0]
    h = x.reshape(B, -1).astype(jnp.float32)
    w1, b1, w2, b2, w3, b3 = params
    h = jnp.maximum(h @ w1 + b1, 0.0)
    h = jnp.maximum(h @ w2 + b2, 0.0)
    return h @ w3 + b3


if __name__ == "__main__":
    key = jax.random.PRNGKey(0)
    k_x, k_p = jax.random.split(key)
    # Small input consistent with the module: flattens to num_channels=24.
    x = jax.random.normal(k_x, (2, 4, 6), dtype=jnp.float32)
    params = init_params(k_p, num_channels=24)

    out = jax.block_until_ready(gps_mlp_forward(x, params))
    ref = reference_forward(x, params)

    assert out.shape == (2, 2), out.shape
    # bf16 matmul inputs vs f32 reference -> looser tolerance.
    assert jnp.allclose(out, ref, atol=5e-2, rtol=5e-2), (out, ref)
    print("KERNEL_OK")
</pallas_src>

<mosaic_0001>
module attributes {stable_mosaic.version = 11 : i64} {
  func.func @gps_mlp_kernel(%arg0: i32, %arg1: memref<24x8xbf16, #tpu.memory_space<vmem>>, %arg2: memref<64x24xbf16, #tpu.memory_space<vmem>>, %arg3: memref<64x1xf32, #tpu.memory_space<vmem>>, %arg4: memref<16x64xbf16, #tpu.memory_space<vmem>>, %arg5: memref<16x1xf32, #tpu.memory_space<vmem>>, %arg6: memref<2x16xbf16, #tpu.memory_space<vmem>>, %arg7: memref<2x1xf32, #tpu.memory_space<vmem>>, %arg8: memref<2x8xf32, #tpu.memory_space<vmem>>) attributes {dimension_semantics = [#tpu.dimension_semantics<parallel>], iteration_bounds = array<i64: 1>, scalar_prefetch = 0 : i64, scratch_operands = 0 : i64, tpu.core_type = #tpu.core_type<tc>, window_params = [{transform_indices = @transform_0, window_bounds = array<i64: 24, 8>}, {pipeline_mode = #tpu.pipeline_mode<synchronous>, transform_indices = @transform_1, window_bounds = array<i64: 64, 24>}, {pipeline_mode = #tpu.pipeline_mode<synchronous>, transform_indices = @transform_2, window_bounds = array<i64: 64, 1>}, {pipeline_mode = #tpu.pipeline_mode<synchronous>, transform_indices = @transform_3, window_bounds = array<i64: 16, 64>}, {pipeline_mode = #tpu.pipeline_mode<synchronous>, transform_indices = @transform_4, window_bounds = array<i64: 16, 1>}, {pipeline_mode = #tpu.pipeline_mode<synchronous>, transform_indices = @transform_5, window_bounds = array<i64: 2, 16>}, {pipeline_mode = #tpu.pipeline_mode<synchronous>, transform_indices = @transform_6, window_bounds = array<i64: 2, 1>}, {transform_indices = @transform_7, window_bounds = array<i64: 2, 8>}]} {
    %c0 = arith.constant 0 : index
    %c0_0 = arith.constant 0 : index
    %0 = vector.load %arg1[%c0, %c0_0] : memref<24x8xbf16, #tpu.memory_space<vmem>>, vector<24x8xbf16>
    %c0_1 = arith.constant 0 : index
    %c0_2 = arith.constant 0 : index
    %1 = vector.load %arg2[%c0_1, %c0_2] : memref<64x24xbf16, #tpu.memory_space<vmem>>, vector<64x24xbf16>
    %cst = arith.constant dense<0.000000e+00> : vector<64x8xf32>
    %2 = tpu.matmul %1, %0, %cst {dimension_numbers = #tpu.dot_dimension_numbers<[1], [0], [0], [1], [0, 0, 1, 1], [], []>} : vector<64x24xbf16>, vector<24x8xbf16>, vector<64x8xf32> -> vector<64x8xf32>
    %c0_3 = arith.constant 0 : index
    %c0_4 = arith.constant 0 : index
    %3 = vector.load %arg3[%c0_3, %c0_4] : memref<64x1xf32, #tpu.memory_space<vmem>>, vector<64x1xf32>
    %4 = vector.broadcast %3 : vector<64x1xf32> to vector<64x8xf32>
    %5 = arith.addf %2, %4 : vector<64x8xf32>
    %cst_5 = arith.constant 0.000000e+00 : f32
    %6 = vector.broadcast %cst_5 : f32 to vector<64x8xf32>
    %7 = arith.maximumf %5, %6 : vector<64x8xf32>
    %c0_6 = arith.constant 0 : index
    %c0_7 = arith.constant 0 : index
    %8 = vector.load %arg4[%c0_6, %c0_7] : memref<16x64xbf16, #tpu.memory_space<vmem>>, vector<16x64xbf16>
    %9 = arith.truncf %7 : vector<64x8xf32> to vector<64x8xbf16>
    %cst_8 = arith.constant dense<0.000000e+00> : vector<16x8xf32>
    %10 = tpu.matmul %8, %9, %cst_8 {dimension_numbers = #tpu.dot_dimension_numbers<[1], [0], [0], [1], [0, 0, 1, 1], [], []>} : vector<16x64xbf16>, vector<64x8xbf16>, vector<16x8xf32> -> vector<16x8xf32>
    %c0_9 = arith.constant 0 : index
    %c0_10 = arith.constant 0 : index
    %11 = vector.load %arg5[%c0_9, %c0_10] : memref<16x1xf32, #tpu.memory_space<vmem>>, vector<16x1xf32>
    %12 = vector.broadcast %11 : vector<16x1xf32> to vector<16x8xf32>
    %13 = arith.addf %10, %12 : vector<16x8xf32>
    %cst_11 = arith.constant 0.000000e+00 : f32
    %14 = vector.broadcast %cst_11 : f32 to vector<16x8xf32>
    %15 = arith.maximumf %13, %14 : vector<16x8xf32>
    %c0_12 = arith.constant 0 : index
    %c0_13 = arith.constant 0 : index
    %16 = vector.load %arg6[%c0_12, %c0_13] : memref<2x16xbf16, #tpu.memory_space<vmem>>, vector<2x16xbf16>
    %17 = arith.truncf %15 : vector<16x8xf32> to vector<16x8xbf16>
    %cst_14 = arith.constant dense<0.000000e+00> : vector<2x8xf32>
    %18 = tpu.matmul %16, %17, %cst_14 {dimension_numbers = #tpu.dot_dimension_numbers<[1], [0], [0], [1], [0, 0, 1, 1], [], []>} : vector<2x16xbf16>, vector<16x8xbf16>, vector<2x8xf32> -> vector<2x8xf32>
    %c0_15 = arith.constant 0 : index
    %c0_16 = arith.constant 0 : index
    %19 = vector.load %arg7[%c0_15, %c0_16] : memref<2x1xf32, #tpu.memory_space<vmem>>, vector<2x1xf32>
    %20 = vector.broadcast %19 : vector<2x1xf32> to vector<2x8xf32>
    %21 = arith.addf %18, %20 : vector<2x8xf32>
    %c0_17 = arith.constant 0 : index
    %c0_18 = arith.constant 0 : index
    %22 = vector.load %arg8[%c0_17, %c0_18] : memref<2x8xf32, #tpu.memory_space<vmem>>, vector<2x8xf32>
    tpu.vector_store %arg8[%c0_17, %c0_18], %21 {strides = array<i32>} : memref<2x8xf32, #tpu.memory_space<vmem>>, vector<2x8xf32>,
    return
  }
  func.func @transform_0(%arg0: i32) -> (i32, i32) {
    %c0_i32 = arith.constant 0 : i32
    %c0_i32_0 = arith.constant 0 : i32
    return %c0_i32, %arg0 : i32, i32
  }
  func.func @transform_1(%arg0: i32) -> (i32, i32) {
    %c0_i32 = arith.constant 0 : i32
    %c0_i32_0 = arith.constant 0 : i32
    %c0_i32_1 = arith.constant 0 : i32
    return %c0_i32, %c0_i32_0 : i32, i32
  }
  func.func @transform_2(%arg0: i32) -> (i32, i32) {
    %c0_i32 = arith.constant 0 : i32
    %c0_i32_0 = arith.constant 0 : i32
    %c0_i32_1 = arith.constant 0 : i32
    return %c0_i32, %c0_i32_0 : i32, i32
  }
  func.func @transform_3(%arg0: i32) -> (i32, i32) {
    %c0_i32 = arith.constant 0 : i32
    %c0_i32_0 = arith.constant 0 : i32
    %c0_i32_1 = arith.constant 0 : i32
    return %c0_i32, %c0_i32_0 : i32, i32
  }
  func.func @transform_4(%arg0: i32) -> (i32, i32) {
    %c0_i32 = arith.constant 0 : i32
    %c0_i32_0 = arith.constant 0 : i32
    %c0_i32_1 = arith.constant 0 : i32
    return %c0_i32, %c0_i32_0 : i32, i32
  }
  func.func @transform_5(%arg0: i32) -> (i32, i32) {
    %c0_i32 = arith.constant 0 : i32
    %c0_i32_0 = arith.constant 0 : i32
    %c0_i32_1 = arith.constant 0 : i32
    return %c0_i32, %c0_i32_0 : i32, i32
  }
  func.func @transform_6(%arg0: i32) -> (i32, i32) {
    %c0_i32 = arith.constant 0 : i32
    %c0_i32_0 = arith.constant 0 : i32
    %c0_i32_1 = arith.constant 0 : i32
    return %c0_i32, %c0_i32_0 : i32, i32
  }
  func.func @transform_7(%arg0: i32) -> (i32, i32) {
    %c0_i32 = arith.constant 0 : i32
    %c0_i32_0 = arith.constant 0 : i32
    return %c0_i32, %arg0 : i32, i32
  }
}

</mosaic_0001>

<llo_original>
// kernel: tpu_custom_call.1
$region0: #{tpu_custom_call.1}
  #allocation0 [shape = 'u32[]', space=smem, size = 0x4, offset = 0x4, fixed_abs, tag = 'smem constant byte address 0x4 - core index']
  #allocation1 [shape = 'u32[144,128]{1,0:T(1,128)}', space=vmem, size = 0x12000, scoped, tag = 'internal scratch']
  %s0 = inlined_call_operand.vmem [shape: bf16[24,8], index: 0, kind: input, shape index: {}]
  %s1 = inlined_call_operand.vmem [shape: bf16[64,24], index: 1, kind: input, shape index: {}]
  %s2 = inlined_call_operand.vmem [shape: f32[64,1], index: 2, kind: input, shape index: {}]
  %s3 = inlined_call_operand.vmem [shape: bf16[16,64], index: 3, kind: input, shape index: {}]
  %s4 = inlined_call_operand.vmem [shape: f32[16,1], index: 4, kind: input, shape index: {}]
  %s5 = inlined_call_operand.vmem [shape: bf16[2,16], index: 5, kind: input, shape index: {}]
  %s6 = inlined_call_operand.vmem [shape: f32[2,1], index: 6, kind: input, shape index: {}]
  %s7 = inlined_call_operand.hbm [shape: f32[2,8], index: 7, kind: output, shape index: {}]
  %s8 = sld [smem:[#allocation0]]
  $region38: #{tpu_custom_call.1} parent=0
    _
  %s10 = ssub.s32 1, %s8
  %s11 = scalar_select 0, %s10, %s8
  $region1: #{tpu_custom_call.1} parent=0
    #allocation2 [shape = 'u8[1024]{0}', space=vmem, size = 0x400, scoped, tag = 'output window, operand 0, single buffered']
    #allocation3 [shape = 's32[1]{0}', space=sflag, size = 0x4, scoped, tag = 'scoped memory for tpu_custom_call.1']
    %12 = vsyncpa [#allocation3], 0
    // Predicated region
    $region2: #{tpu_custom_call.1} parent=1 // pred_check
      _
    $region3: #{tpu_custom_call.1} parent=1 // pred_check_branch
      %14 = sbr.rel (0) target = $region5
    $region4: #{tpu_custom_call.1} parent=1 // pred_region
      _
    $region5: #{tpu_custom_call.1} parent=1 // pred_fallthru
      _
    // Predicated region
    $region6: #{tpu_custom_call.1} parent=1 // pred_check
      _
    $region7: #{tpu_custom_call.1} parent=1 // pred_check_branch
      %16 = sbr.rel (0) target = $region9
    $region8: #{tpu_custom_call.1} parent=1 // pred_region
      _
    $region9: #{tpu_custom_call.1} parent=1 // pred_fallthru
      _
    // Predicated region
    $region10: #{tpu_custom_call.1} parent=1 // pred_check
      _
    $region11: #{tpu_custom_call.1} parent=1 // pred_check_branch
      %18 = sbr.rel (0) target = $region13
    $region12: #{tpu_custom_call.1} parent=1 // pred_region
      _
    $region13: #{tpu_custom_call.1} parent=1 // pred_fallthru
      _
    // Predicated region
    $region14: #{tpu_custom_call.1} parent=1 // pred_check
      _
    $region15: #{tpu_custom_call.1} parent=1 // pred_check_branch
      %20 = sbr.rel (0) target = $region17
    $region16: #{tpu_custom_call.1} parent=1 // pred_region
      _
    $region17: #{tpu_custom_call.1} parent=1 // pred_fallthru
      _
    // Predicated region
    $region18: #{tpu_custom_call.1} parent=1 // pred_check
      _
    $region19: #{tpu_custom_call.1} parent=1 // pred_check_branch
      %22 = sbr.rel (0) target = $region21
    $region20: #{tpu_custom_call.1} parent=1 // pred_region
      _
    $region21: #{tpu_custom_call.1} parent=1 // pred_fallthru
      _
    // Predicated region
    $region22: #{tpu_custom_call.1} parent=1 // pred_check
      _
    $region23: #{tpu_custom_call.1} parent=1 // pred_check_branch
      %24 = sbr.rel (0) target = $region25
    $region24: #{tpu_custom_call.1} parent=1 // pred_region
      _
    $region25: #{tpu_custom_call.1} parent=1 // pred_fallthru
      _
    // Predicated region
    $region26: #{tpu_custom_call.1} parent=1 // pred_check
      _
    $region27: #{tpu_custom_call.1} parent=1 // pred_check_branch
      %26 = sbr.rel (0) target = $region29
    $region28: #{tpu_custom_call.1} parent=1 // pred_region
      _
    $region29: #{tpu_custom_call.1} parent=1 // pred_fallthru
      _
    %v28 = vld [vmem:[%s0] sm:$0xf]
    %v29 = vld [vmem:[%s0 + $0x4] sm:$0xf]
    %v30 = vld [vmem:[%s0 + $0x8] sm:$0xf]
    %v31 = vld [vmem:[%s1] sm:$0xf]
    %v32 = vld [vmem:[%s1 + $0x4] sm:$0xf]
    %v33 = vld [vmem:[%s1 + $0x8] sm:$0xf]
    %v34 = vld [vmem:[%s1 + $0xc] sm:$0xf]
    %v35 = vld [vmem:[%s1 + $0x10] sm:$0xf]
    %v36 = vld [vmem:[%s1 + $0x14] sm:$0xf]
    %v37 = vld [vmem:[%s1 + $0x18] sm:$0xf]
    %v38 = vld [vmem:[%s1 + $0x1c] sm:$0xf]
    %v39 = vld [vmem:[%s2] sm:$0xff]
    %v40 = vld [vmem:[%s2 + $0x8] sm:$0xff]
    %v41 = vld [vmem:[%s2 + $0x10] sm:$0xff]
    %v42 = vld [vmem:[%s2 + $0x18] sm:$0xff]
    %v43 = vld [vmem:[%s2 + $0x20] sm:$0xff]
    %v44 = vld [vmem:[%s2 + $0x28] sm:$0xff]
    %v45 = vld [vmem:[%s2 + $0x30] sm:$0xff]
    %v46 = vld [vmem:[%s2 + $0x38] sm:$0xff]
    %48 = vset.pattern.permute.xlu0 0
    %49 = vperm.xlu0 %48, %v39
    %v50 = vpop.permute.xlu0 %49
    %53 = vset.pattern.permute.xlu0 0
    %54 = vperm.xlu0 %53, %v40
    %v55 = vpop.permute.xlu0 %54
    %58 = vset.pattern.permute.xlu0 0
    %59 = vperm.xlu0 %58, %v41
    %v60 = vpop.permute.xlu0 %59
    %63 = vset.pattern.permute.xlu0 0
    %64 = vperm.xlu0 %63, %v42
    %v65 = vpop.permute.xlu0 %64
    %68 = vset.pattern.permute.xlu0 0
    %69 = vperm.xlu0 %68, %v43
    %v70 = vpop.permute.xlu0 %69
    %73 = vset.pattern.permute.xlu0 0
    %74 = vperm.xlu0 %73, %v44
    %v75 = vpop.permute.xlu0 %74
    %78 = vset.pattern.permute.xlu0 0
    %79 = vperm.xlu0 %78, %v45
    %v80 = vpop.permute.xlu0 %79
    %83 = vset.pattern.permute.xlu0 0
    %84 = vperm.xlu0 %83, %v46
    %v85 = vpop.permute.xlu0 %84
    %v95 = vunpack.c.l.b16 %v31
    %v96 = vunpack.c.l.b16 %v32
    %v97 = vunpack.c.l.b16 %v33
    %v98 = vunpack.c.l.b16 %v34
    %v99 = vunpack.c.l.b16 %v35
    %v100 = vunpack.c.l.b16 %v36
    %v101 = vunpack.c.l.b16 %v37
    %v102 = vunpack.c.l.b16 %v38
    %v103 = vpack.c.b16 %v96, %v95
    %v104 = vpack.c.b16 %v98, %v97
    %v105 = vpack.c.b16 %v100, %v99
    %v106 = vpack.c.b16 %v102, %v101
    %v110 = vunpack.c.l.b16 %v28
    %v111 = vunpack.c.l.b16 %v29
    %v112 = vunpack.c.l.b16 %v30
    %v113 = vpack.c.b16 %v111, %v110
    %v114 = vpack.c.b16 %v112, %v112
    %vm116 = vcmask 195584
    %v118 = vsel %vm116, %v103, 0
    %v121 = vsel %vm116, %v104, 0
    %v124 = vsel %vm116, %v105, 0
    %v127 = vsel %vm116, %v106, 0
    %vm129 = vcmask 1043456
    %v131 = vsel %vm129, %v114, 0
    %133 = vmatprep.subr.bf16.mxu0 0
    %134 = vmatpush1.bf16.msra.mxu0 %v113
    %135 = vmatprep.subr.bf16.mxu0 0
    %136 = vmatpush1.bf16.msra.mxu0 %v131
    %137 = vmatprep.subr.bf16.mxu0 0
    %138 = vmatpush1.bf16.msra.mxu0 0
    %139 = vmatprep.subr.bf16.mxu0 0
    %140 = vmatpush1.bf16.msra.mxu0 0
    %141 = vmatprep.subr.bf16.mxu0 0
    %142 = vmatpush1.bf16.msra.mxu0 0
    %143 = vmatprep.subr.bf16.mxu0 0
    %144 = vmatpush1.bf16.msra.mxu0 0
    %145 = vmatprep.subr.bf16.mxu0 0
    %146 = vmatpush1.bf16.msra.mxu0 0
    %147 = vmatprep.subr.bf16.mxu0 0
    %148 = vmatpush1.bf16.msra.mxu0 0
    %149 = vmatprep.subr.bf16.mxu0 0
    %150 = vmatpush1.bf16.msra.mxu0 0
    %151 = vmatprep.subr.bf16.mxu0 0
    %152 = vmatpush1.bf16.msra.mxu0 0
    %153 = vmatprep.subr.bf16.mxu0 0
    %154 = vmatpush1.bf16.msra.mxu0 0
    %155 = vmatprep.subr.bf16.mxu0 0
    %156 = vmatpush1.bf16.msra.mxu0 0
    %157 = vmatprep.subr.bf16.mxu0 0
    %158 = vmatpush1.bf16.msra.mxu0 0
    %159 = vmatprep.subr.bf16.mxu0 0
    %160 = vmatpush1.bf16.msra.mxu0 0
    %161 = vmatprep.subr.bf16.mxu0 0
    %162 = vmatpush1.bf16.msra.mxu0 0
    %163 = vmatprep.subr.bf16.mxu0 0
    %164 = vmatpush1.bf16.msra.mxu0 0
    %165 = vmatprep.mubr.bf16.mxu0 0
    %166 = vmatmul.mubr.bf16.gmra.mrb[0].mxu0 %v118
    %v167 = vpop.f32.mrb[0].mxu0
    %v168 = vadd.f32 %v50, %v167
    %v169 = vpop.f32.mrb[0].mxu0
    %v170 = vpop.f32.mrb[0].mxu0
    %v171 = vadd.f32 %v55, %v170
    %v172 = vpop.f32.mrb[0].mxu0
    %173 = vmatprep.mubr.bf16.mxu0 0
    %174 = vmatmul.mubr.bf16.gmra.mrb[0].mxu0 %v121
    %v175 = vpop.f32.mrb[0].mxu0
    %v176 = vadd.f32 %v60, %v175
    %v177 = vpop.f32.mrb[0].mxu0
    %v178 = vpop.f32.mrb[0].mxu0
    %v179 = vadd.f32 %v65, %v178
    %v180 = vpop.f32.mrb[0].mxu0
    %181 = vmatprep.mubr.bf16.mxu0 0
    %182 = vmatmul.mubr.bf16.gmra.mrb[0].mxu0 %v124
    %v183 = vpop.f32.mrb[0].mxu0
    %v184 = vadd.f32 %v70, %v183
    %v185 = vpop.f32.mrb[0].mxu0
    %v186 = vpop.f32.mrb[0].mxu0
    %v187 = vadd.f32 %v75, %v186
    %v188 = vpop.f32.mrb[0].mxu0
    %189 = vmatprep.mubr.bf16.mxu0 0
    %190 = vmatmul.mubr.bf16.gmra.mrb[0].mxu0 %v127
    %v191 = vpop.f32.mrb[0].mxu0
    %v192 = vadd.f32 %v80, %v191
    %v193 = vpop.f32.mrb[0].mxu0
    %v194 = vpop.f32.mrb[0].mxu0
    %v195 = vadd.f32 %v85, %v194
    %v196 = vpop.f32.mrb[0].mxu0
    %197 = vdwg.mxu0
    %v198 = vmax.f32 %v168, 0.0
    %v199 = vmax.f32 %v171, 0.0
    %v200 = vmax.f32 %v176, 0.0
    %v201 = vmax.f32 %v179, 0.0
    %v202 = vmax.f32 %v184, 0.0
    %v203 = vmax.f32 %v187, 0.0
    %v204 = vmax.f32 %v192, 0.0
    %v205 = vmax.f32 %v195, 0.0
    %v206 = vld [vmem:[%s3] sm:$0xf]
    %v207 = vld [vmem:[%s3 + $0x4] sm:$0xf]
    %v208 = vpack.c.bf16 %v199, %v198
    %v209 = vpack.c.bf16 %v201, %v200
    %v210 = vpack.c.bf16 %v203, %v202
    %v211 = vpack.c.bf16 %v205, %v204
    %v212 = vld [vmem:[%s4] sm:$0xff]
    %v213 = vld [vmem:[%s4 + $0x8] sm:$0xff]
    %215 = vset.pattern.permute.xlu0 0
    %216 = vperm.xlu0 %215, %v212
    %v217 = vpop.permute.xlu0 %216
    %220 = vset.pattern.permute.xlu0 0
    %221 = vperm.xlu0 %220, %v213
    %v222 = vpop.permute.xlu0 %221
    %v226 = vunpack.c.l.b16 %v206
    %v227 = vunpack.c.l.b16 %v207
    %v228 = vpack.c.b16 %v227, %v226
    %vm229 = vcmask 523264
    %v231 = vsel %vm229, %v228, 0
    %233 = vmatprep.subr.bf16.mxu0 0
    %234 = vmatpush1.bf16.msra.mxu0 %v208
    %235 = vmatprep.subr.bf16.mxu0 0
    %236 = vmatpush1.bf16.msra.mxu0 %v209
    %237 = vmatprep.subr.bf16.mxu0 0
    %238 = vmatpush1.bf16.msra.mxu0 %v210
    %239 = vmatprep.subr.bf16.mxu0 0
    %240 = vmatpush1.bf16.msra.mxu0 %v211
    %241 = vmatprep.subr.bf16.mxu0 0
    %242 = vmatpush1.bf16.msra.mxu0 0
    %243 = vmatprep.subr.bf16.mxu0 0
    %244 = vmatpush1.bf16.msra.mxu0 0
    %245 = vmatprep.subr.bf16.mxu0 0
    %246 = vmatpush1.bf16.msra.mxu0 0
    %247 = vmatprep.subr.bf16.mxu0 0
    %248 = vmatpush1.bf16.msra.mxu0 0
    %249 = vmatprep.subr.bf16.mxu0 0
    %250 = vmatpush1.bf16.msra.mxu0 0
    %251 = vmatprep.subr.bf16.mxu0 0
    %252 = vmatpush1.bf16.msra.mxu0 0
    %253 = vmatprep.subr.bf16.mxu0 0
    %254 = vmatpush1.bf16.msra.mxu0 0
    %255 = vmatprep.subr.bf16.mxu0 0
    %256 = vmatpush1.bf16.msra.mxu0 0
    %257 = vmatprep.subr.bf16.mxu0 0
    %258 = vmatpush1.bf16.msra.mxu0 0
    %259 = vmatprep.subr.bf16.mxu0 0
    %260 = vmatpush1.bf16.msra.mxu0 0
    %261 = vmatprep.subr.bf16.mxu0 0
    %262 = vmatpush1.bf16.msra.mxu0 0
    %263 = vmatprep.subr.bf16.mxu0 0
    %264 = vmatpush1.bf16.msra.mxu0 0
    %265 = vmatprep.mubr.bf16.mxu0 0
    %266 = vmatmul.mubr.bf16.gmra.mrb[0].mxu0 %v231
    %v267 = vpop.f32.mrb[0].mxu0
    %v268 = vadd.f32 %v217, %v267
    %v269 = vpop.f32.mrb[0].mxu0
    %v270 = vpop.f32.mrb[0].mxu0
    %v271 = vadd.f32 %v222, %v270
    %v272 = vpop.f32.mrb[0].mxu0
    %273 = vdwg.mxu0
    %v274 = vmax.f32 %v268, 0.0
    %v275 = vmax.f32 %v271, 0.0
    %v276 = vld [vmem:[%s5] sm:$0x1]
    %v277 = vpack.c.bf16 %v275, %v274
    %v278 = vld [vmem:[%s6] sm:$0x3]
    %280 = vset.pattern.permute.xlu0 0
    %281 = vperm.xlu0 %280, %v278
    %v282 = vpop.permute.xlu0 %281
    %vm284 = vcmask 130048
    %v286 = vsel %vm284, %v276, 0
    %288 = vmatprep.subr.bf16.mxu0 0
    %289 = vmatpush1.bf16.msra.mxu0 %v277
    %290 = vmatprep.subr.bf16.mxu0 0
    %291 = vmatpush1.bf16.msra.mxu0 0
    %292 = vmatprep.subr.bf16.mxu0 0
    %293 = vmatpush1.bf16.msra.mxu0 0
    %294 = vmatprep.subr.bf16.mxu0 0
    %295 = vmatpush1.bf16.msra.mxu0 0
    %296 = vmatprep.subr.bf16.mxu0 0
    %297 = vmatpush1.bf16.msra.mxu0 0
    %298 = vmatprep.subr.bf16.mxu0 0
    %299 = vmatpush1.bf16.msra.mxu0 0
    %300 = vmatprep.subr.bf16.mxu0 0
    %301 = vmatpush1.bf16.msra.mxu0 0
    %302 = vmatprep.subr.bf16.mxu0 0
    %303 = vmatpush1.bf16.msra.mxu0 0
    %304 = vmatprep.subr.bf16.mxu0 0
    %305 = vmatpush1.bf16.msra.mxu0 0
    %306 = vmatprep.subr.bf16.mxu0 0
    %307 = vmatpush1.bf16.msra.mxu0 0
    %308 = vmatprep.subr.bf16.mxu0 0
    %309 = vmatpush1.bf16.msra.mxu0 0
    %310 = vmatprep.subr.bf16.mxu0 0
    %311 = vmatpush1.bf16.msra.mxu0 0
    %312 = vmatprep.subr.bf16.mxu0 0
    %313 = vmatpush1.bf16.msra.mxu0 0
    %314 = vmatprep.subr.bf16.mxu0 0
    %315 = vmatpush1.bf16.msra.mxu0 0
    %316 = vmatprep.subr.bf16.mxu0 0
    %317 = vmatpush1.bf16.msra.mxu0 0
    %318 = vmatprep.subr.bf16.mxu0 0
    %319 = vmatpush1.bf16.msra.mxu0 0
    %320 = vmatprep.mubr.bf16.mxu0 0
    %321 = vmatmul.mubr.bf16.gmra.mrb[0].mxu0 %v286
    %v322 = vpop.f32.mrb[0].mxu0
    %v323 = vadd.f32 %v282, %v322
    %v324 = vpop.f32.mrb[0].mxu0
    %v325 = vpop.f32.mrb[0].mxu0
    %v326 = vpop.f32.mrb[0].mxu0
    %327 = vdwg.mxu0
    %vm328 = vcmask 58368
    %329 = vst.msk [vmem:[#allocation2] sm:$0x3] %vm328, %v323
    // Predicated region
    $region30: #{tpu_custom_call.1} parent=1 // pred_check
      _
    $region31: #{tpu_custom_call.1} parent=1 // pred_check_branch
      %331 = sbr.rel (0) target = $region33
    $region32: #{tpu_custom_call.1} parent=1 // pred_region
      %s333 = ssub.s32 32, 32
      %334 = vsyncadd [#allocation3], %s333
      %s336 = sshll.u32 [#allocation2], 4
      %s337 = int_to_ptr.vmem [resolvable:$true] %s336
      %339 = dma.vmem_to_hbm [thread:$0]  %s337, 32, %s7, [#allocation3]
    $region33: #{tpu_custom_call.1} parent=1 // pred_fallthru
      _
    // Predicated region
    $region34: #{tpu_custom_call.1} parent=1 // pred_check
      _
    $region35: #{tpu_custom_call.1} parent=1 // pred_check_branch
      %341 = sbr.rel (0) target = $region37
    $region36: #{tpu_custom_call.1} parent=1 // pred_region
      %342 = dma.done [#allocation3], 32
    $region37: #{tpu_custom_call.1} parent=1 // pred_fallthru
      _
    %343 = vsyncpa [#allocation3], 1

</llo_original>
